<compile_context>
chip_gen: v7x
topology: tpu7x:2x2x1
jax: 0.10.0
libtpu: 0.0.40
codegen_flags: <defaults>
</compile_context>

<pallas_src>
import functools

import jax
import jax.numpy as jnp
import numpy as np
from jax.experimental import pallas as pl
from jax.experimental.pallas import tpu as pltpu

_LANES = 128
_SUBLANES = 8
_MAX_BLOCK_ROWS = 2048      # 2048*128 pts/step: 4 MiB in + 3 MiB out, 14 MiB dbl-buffered
_MIN_GRID_STEPS = 2         # give both v7x TensorCores work when possible


def _round_up(x, m):
    return -(-x // m) * m


# ----------------------------------------------------------------------------
# Kernel
# ----------------------------------------------------------------------------
def _unproject_kernel(tbl_ref, in_ref, out_ref, *, n_cam):
    """Per-tile unprojection.

    tbl_ref : SMEM (n_cam*12,) f32 (scalar-prefetched) -- per camera
              [G row-major (9), t (3)], G = Rodrigues(rotvec) @ K^-1 / scale.
    in_ref  : VMEM (4, R, 128) f32 -- depth, u, v, cam_id (small int stored
              exactly as float32).
    out_ref : VMEM (3, R, 128) f32 -- world xyz.

    pcd = depth * (G @ [u, v, 1]^T) + t, camera selected per point by a
    compare/select sweep over the SMEM table.  The sweep is structured per
    output channel so temporaries are reused and nothing spills to VMEM.
    """
    for r in range(3):                       # finish one output channel at a time
        d = in_ref[0]
        u = in_ref[1]
        v = in_ref[2]
        ids = in_ref[3]                      # exact small integers in f32
        b = 3 * r
        # camera-0 baseline as SMEM scalars; the first where() broadcasts them.
        g0 = tbl_ref[b + 0]
        g1 = tbl_ref[b + 1]
        g2 = tbl_ref[b + 2]
        t = tbl_ref[9 + r]
        for c in range(1, n_cam):
            m = ids == jnp.float32(c)
            base = 12 * c
            g0 = jnp.where(m, tbl_ref[base + b + 0], g0)
            g1 = jnp.where(m, tbl_ref[base + b + 1], g1)
            g2 = jnp.where(m, tbl_ref[base + b + 2], g2)
            t = jnp.where(m, tbl_ref[base + 9 + r], t)
        out_ref[r] = (g0 * u + g1 * v + g2) * d + t
    # TODO(synk): for large n_cam, add a segment-sorted variant (points sorted
    # by cam_id, per-block camera index via scalar prefetch) to drop the sweep.


# ----------------------------------------------------------------------------
# Tiling / packing / pallas_call wrapper
# ----------------------------------------------------------------------------
def _choose_tiling(n):
    n_rows = max(1, -(-n // _LANES))
    n_rows8 = _round_up(n_rows, _SUBLANES)          # keep (8,128)-aligned tiles
    if n_rows8 >= _MIN_GRID_STEPS * _SUBLANES:
        n_steps = max(_MIN_GRID_STEPS, -(-n_rows8 // _MAX_BLOCK_ROWS))
    else:
        n_steps = 1
    block_rows = min(_MAX_BLOCK_ROWS,
                     _round_up(-(-n_rows8 // n_steps), _SUBLANES))
    n_steps = -(-n_rows8 // block_rows)
    n_rows_pad = n_steps * block_rows
    return block_rows, n_steps, n_rows_pad


def pack_inputs(depths, points, cam_ids):
    """Single pad/reshape pass producing the fused (4, rows, 128) input slab.

    In an optimizer loop (points/depths/cam_ids fixed, only camera parameters
    changing) compute this once and reuse it across iterations; only the tiny
    (n_cam*12,) camera table changes."""
    n = depths.shape[0]
    block_rows, n_steps, n_rows_pad = _choose_tiling(n)
    pad = n_rows_pad * _LANES - n
    packed = jnp.stack([
        jnp.asarray(depths, jnp.float32),
        jnp.asarray(points[:, 0], jnp.float32),
        jnp.asarray(points[:, 1], jnp.float32),
        jnp.asarray(cam_ids, jnp.int32).astype(jnp.float32),
    ], axis=0)                                               # (4, N)
    packed = jnp.pad(packed, ((0, 0), (0, pad)))             # pad -> cam 0, depth 0
    packed = packed.reshape(4, n_rows_pad, _LANES)
    return packed, n, block_rows, n_steps


def unproject_packed(packed, cam_table, n_cam, n, block_rows, n_steps):
    n_rows_pad = packed.shape[1]
    kernel = functools.partial(_unproject_kernel, n_cam=int(n_cam))
    out = pl.pallas_call(
        kernel,
        out_shape=jax.ShapeDtypeStruct((3, n_rows_pad, _LANES), jnp.float32),
        grid_spec=pltpu.PrefetchScalarGridSpec(
            num_scalar_prefetch=1,                  # camera table -> SMEM once
            grid=(n_steps,),
            in_specs=[
                pl.BlockSpec((4, block_rows, _LANES), lambda i, tbl: (0, i, 0)),
            ],
            out_specs=pl.BlockSpec((3, block_rows, _LANES),
                                   lambda i, tbl: (0, i, 0)),
        ),
        compiler_params=pltpu.CompilerParams(
            dimension_semantics=("parallel",),       # megacore-shards rows (v7x)
            vmem_limit_bytes=32 * 1024 * 1024),
    )(cam_table, packed)
    # Keep the module's (N, 3) output contract (one cheap transpose pass).
    # Note: padded tail rows are garbage; they are sliced off here and must not
    # be consumed from the raw kernel output.
    return out.reshape(3, n_rows_pad * _LANES)[:, :n].T


def unproject_points_rotvec_pallas(depths, points, cam_ids, cam_table, n_cam):
    """depths (N,), points (N,2), cam_ids (N,) int, cam_table (n_cam*12,) f32.
    Returns world points (N, 3) f32."""
    packed, n, block_rows, n_steps = pack_inputs(depths, points, cam_ids)
    return unproject_packed(packed, cam_table, n_cam, n, block_rows, n_steps)


# ----------------------------------------------------------------------------
# Per-camera precompute (tiny (n_cam, .) arrays, plain JAX)
# ----------------------------------------------------------------------------
def _rodrigues_matrices(rotvecs):
    rotvecs = jnp.asarray(rotvecs, jnp.float32)
    theta2 = jnp.sum(rotvecs * rotvecs, axis=-1)
    theta = jnp.sqrt(theta2)
    small = theta < 1e-6
    theta_safe = jnp.where(small, 1.0, theta)
    theta2_safe = jnp.where(small, 1.0, theta2)
    a = jnp.where(small, 1.0 - theta2 / 6.0, jnp.sin(theta) / theta_safe)
    b = jnp.where(small, 0.5 - theta2 / 24.0,
                  (1.0 - jnp.cos(theta)) / theta2_safe)
    wx, wy, wz = rotvecs[:, 0], rotvecs[:, 1], rotvecs[:, 2]
    zero = jnp.zeros_like(wx)
    K = jnp.stack([
        jnp.stack([zero, -wz, wy], -1),
        jnp.stack([wz, zero, -wx], -1),
        jnp.stack([-wy, wx, zero], -1),
    ], axis=1)                                                  # (C,3,3)
    I = jnp.eye(3, dtype=jnp.float32)[None]
    KK = jnp.einsum("cij,cjk->cik", K, K)
    return I + a[:, None, None] * K + b[:, None, None] * KK


def _build_camera_table(rotvecs, translations, f, pp, scale):
    """(n_cam*12,) f32: per camera [G row-major (9), t (3)],
    G = Rodrigues(rotvec) @ [[1/fx,0,-cx/fx],[0,1/fy,-cy/fy],[0,0,1]] / scale."""
    R = _rodrigues_matrices(rotvecs)                            # (C,3,3)
    f = jnp.asarray(f, jnp.float32)
    pp = jnp.asarray(pp, jnp.float32)
    t = jnp.asarray(translations, jnp.float32)
    inv_f = 1.0 / f
    zeros = jnp.zeros_like(inv_f[:, 0])
    ones = jnp.ones_like(zeros)
    M = jnp.stack([
        jnp.stack([inv_f[:, 0], zeros, -pp[:, 0] * inv_f[:, 0]], -1),
        jnp.stack([zeros, inv_f[:, 1], -pp[:, 1] * inv_f[:, 1]], -1),
        jnp.stack([zeros, zeros, ones], -1),
    ], axis=1)                                                  # (C,3,3)
    G = jnp.einsum("cij,cjk->cik", R, M) / float(scale)
    table = jnp.concatenate([G.reshape(-1, 9), t], axis=1)      # (C,12)
    return table.reshape(-1).astype(jnp.float32)


# ----------------------------------------------------------------------------
# Module-level glue mirroring the PyTorch classes
# ----------------------------------------------------------------------------
class CameraParameters:
    """Deterministic synthetic stand-in for facap's camera-parameter container."""

    def __init__(self, rotvecs, translations, f, pp):
        self.rotvecs = rotvecs            # (n_cam, 3)
        self.translations = translations  # (n_cam, 3)
        self.f = f                        # (n_cam, 2)
        self.pp = pp                      # (n_cam, 2)

    def get_tensors(self, cam_ids):       # per-point gather (reference path)
        ids = jnp.asarray(cam_ids, jnp.int32)
        return (jnp.take(self.rotvecs, ids, axis=0),
                jnp.take(self.translations, ids, axis=0),
                jnp.take(self.f, ids, axis=0),
                jnp.take(self.pp, ids, axis=0))


class Unproject:
    def __init__(self, camera_parameters, scale):
        self.camera_parameters = camera_parameters
        self.scale = float(scale)
        self.n_cam = int(camera_parameters.rotvecs.shape[0])
        # Fold intrinsics + Rodrigues + 1/scale into one small per-camera table.
        self._table = _build_camera_table(
            camera_parameters.rotvecs, camera_parameters.translations,
            camera_parameters.f, camera_parameters.pp, self.scale)

    def __call__(self, depths, points, cam_ids):
        cam_ids = jnp.asarray(cam_ids, jnp.int32)
        if cam_ids.shape[0] == 1:
            cam_ids = jnp.broadcast_to(cam_ids, (depths.shape[0],))
        return unproject_points_rotvec_pallas(
            depths, points, cam_ids, self._table, self.n_cam)


# ----------------------------------------------------------------------------
# Pure-JAX reference (mirrors the original per-point torch computation)
# ----------------------------------------------------------------------------
def _reference(depths, points, f, pp, rotvecs, translations, scale):
    x = (points[:, 0] - pp[:, 0]) / f[:, 0]
    y = (points[:, 1] - pp[:, 1]) / f[:, 1]
    z = depths / scale
    cam = jnp.stack([x * z, y * z, z], axis=-1)
    theta = jnp.linalg.norm(rotvecs, axis=-1, keepdims=True)
    k = rotvecs / jnp.maximum(theta, 1e-12)
    zero = jnp.zeros_like(k[:, 0])
    K = jnp.stack([
        jnp.stack([zero, -k[:, 2], k[:, 1]], -1),
        jnp.stack([k[:, 2], zero, -k[:, 0]], -1),
        jnp.stack([-k[:, 1], k[:, 0], zero], -1),
    ], axis=1)
    I = jnp.eye(3, dtype=jnp.float32)[None]
    st = jnp.sin(theta)[..., None]
    ct = jnp.cos(theta)[..., None]
    R = I + st * K + (1.0 - ct) * jnp.einsum("nij,njk->nik", K, K)
    return jnp.einsum("nij,nj->ni", R, cam) + translations


if __name__ == "__main__":
    key = jax.random.PRNGKey(0)
    n_cam = 4
    scale = 1000.0

    k1, k2, k3, k4 = jax.random.split(key, 4)
    cam_rotvecs = 0.3 * jax.random.normal(k1, (n_cam, 3), jnp.float32)
    cam_trans = jax.random.normal(k2, (n_cam, 3), jnp.float32)
    cam_f = 500.0 + 100.0 * jax.random.uniform(k3, (n_cam, 2), jnp.float32)
    cam_pp = 320.0 + 5.0 * jax.random.normal(k4, (n_cam, 2), jnp.float32)

    camera_parameters = CameraParameters(cam_rotvecs, cam_trans, cam_f, cam_pp)
    module = Unproject(camera_parameters, scale)

    # Two sizes: 300 (padding + single small 8-row block) and 5000 (multi-step
    # grid, exercising the megacore-parallel path).
    for n_pts, kk in ((300, 5), (5000, 11)):
        k5, k6, k7 = jax.random.split(jax.random.fold_in(key, kk), 3)
        depths = 1000.0 * jax.random.uniform(k5, (n_pts,), jnp.float32,
                                             minval=0.5, maxval=5.0)
        points = 640.0 * jax.random.uniform(k6, (n_pts, 2), jnp.float32)
        cam_ids = jax.random.randint(k7, (n_pts,), 0, n_cam)

        pcd = jax.block_until_ready(module(depths, points, cam_ids))

        rv, tr, f, pp = camera_parameters.get_tensors(cam_ids)
        ref = jax.block_until_ready(
            _reference(depths, points, f, pp, rv, tr, scale))
        np.testing.assert_allclose(np.asarray(pcd), np.asarray(ref),
                                   rtol=1e-4, atol=1e-4)
        assert pcd.shape == (n_pts, 3)

    print("KERNEL_OK")
</pallas_src>

<mosaic_0001>
module attributes {stable_mosaic.version = 11 : i64} {
  func.func @_unproject_kernel(%arg0: i32, %arg1: memref<48xf32, #tpu.memory_space<smem>>, %arg2: memref<4x8x128xf32, #tpu.memory_space<vmem>>, %arg3: memref<3x8x128xf32, #tpu.memory_space<vmem>>) attributes {dimension_semantics = [#tpu.dimension_semantics<parallel>], iteration_bounds = array<i64: 1>, scalar_prefetch = 1 : i64, scratch_operands = 0 : i64, tpu.core_type = #tpu.core_type<tc>, window_params = [{transform_indices = @transform_0, window_bounds = array<i64: 4, 8, 128>}, {transform_indices = @transform_1, window_bounds = array<i64: 3, 8, 128>}]} {
    %c0 = arith.constant 0 : index
    %c0_0 = arith.constant 0 : index
    %c0_1 = arith.constant 0 : index
    %0 = vector.load %arg2[%c0, %c0_0, %c0_1] : memref<4x8x128xf32, #tpu.memory_space<vmem>>, vector<1x8x128xf32>
    %1 = vector.shape_cast %0 : vector<1x8x128xf32> to vector<8x128xf32>
    %c1 = arith.constant 1 : index
    %c0_2 = arith.constant 0 : index
    %c0_3 = arith.constant 0 : index
    %2 = vector.load %arg2[%c1, %c0_2, %c0_3] : memref<4x8x128xf32, #tpu.memory_space<vmem>>, vector<1x8x128xf32>
    %3 = vector.shape_cast %2 : vector<1x8x128xf32> to vector<8x128xf32>
    %c2 = arith.constant 2 : index
    %c0_4 = arith.constant 0 : index
    %c0_5 = arith.constant 0 : index
    %4 = vector.load %arg2[%c2, %c0_4, %c0_5] : memref<4x8x128xf32, #tpu.memory_space<vmem>>, vector<1x8x128xf32>
    %5 = vector.shape_cast %4 : vector<1x8x128xf32> to vector<8x128xf32>
    %c3 = arith.constant 3 : index
    %c0_6 = arith.constant 0 : index
    %c0_7 = arith.constant 0 : index
    %6 = vector.load %arg2[%c3, %c0_6, %c0_7] : memref<4x8x128xf32, #tpu.memory_space<vmem>>, vector<1x8x128xf32>
    %7 = vector.shape_cast %6 : vector<1x8x128xf32> to vector<8x128xf32>
    %c0_8 = arith.constant 0 : index
    %8 = memref.load %arg1[%c0_8] : memref<48xf32, #tpu.memory_space<smem>>
    %c1_9 = arith.constant 1 : index
    %9 = memref.load %arg1[%c1_9] : memref<48xf32, #tpu.memory_space<smem>>
    %c2_10 = arith.constant 2 : index
    %10 = memref.load %arg1[%c2_10] : memref<48xf32, #tpu.memory_space<smem>>
    %c9 = arith.constant 9 : index
    %11 = memref.load %arg1[%c9] : memref<48xf32, #tpu.memory_space<smem>>
    %cst = arith.constant 1.000000e+00 : f32
    %12 = vector.broadcast %cst : f32 to vector<8x128xf32>
    %13 = arith.cmpf oeq, %7, %12 : vector<8x128xf32>
    %c12 = arith.constant 12 : index
    %14 = memref.load %arg1[%c12] : memref<48xf32, #tpu.memory_space<smem>>
    %15 = vector.broadcast %14 : f32 to vector<8x128xf32>
    %16 = vector.broadcast %8 : f32 to vector<8x128xf32>
    %17 = arith.select %13, %15, %16 : vector<8x128xi1>, vector<8x128xf32>
    %c13 = arith.constant 13 : index
    %18 = memref.load %arg1[%c13] : memref<48xf32, #tpu.memory_space<smem>>
    %19 = vector.broadcast %18 : f32 to vector<8x128xf32>
    %20 = vector.broadcast %9 : f32 to vector<8x128xf32>
    %21 = arith.select %13, %19, %20 : vector<8x128xi1>, vector<8x128xf32>
    %c14 = arith.constant 14 : index
    %22 = memref.load %arg1[%c14] : memref<48xf32, #tpu.memory_space<smem>>
    %23 = vector.broadcast %22 : f32 to vector<8x128xf32>
    %24 = vector.broadcast %10 : f32 to vector<8x128xf32>
    %25 = arith.select %13, %23, %24 : vector<8x128xi1>, vector<8x128xf32>
    %c21 = arith.constant 21 : index
    %26 = memref.load %arg1[%c21] : memref<48xf32, #tpu.memory_space<smem>>
    %27 = vector.broadcast %26 : f32 to vector<8x128xf32>
    %28 = vector.broadcast %11 : f32 to vector<8x128xf32>
    %29 = arith.select %13, %27, %28 : vector<8x128xi1>, vector<8x128xf32>
    %cst_11 = arith.constant 2.000000e+00 : f32
    %30 = vector.broadcast %cst_11 : f32 to vector<8x128xf32>
    %31 = arith.cmpf oeq, %7, %30 : vector<8x128xf32>
    %c24 = arith.constant 24 : index
    %32 = memref.load %arg1[%c24] : memref<48xf32, #tpu.memory_space<smem>>
    %33 = vector.broadcast %32 : f32 to vector<8x128xf32>
    %34 = arith.select %31, %33, %17 : vector<8x128xi1>, vector<8x128xf32>
    %c25 = arith.constant 25 : index
    %35 = memref.load %arg1[%c25] : memref<48xf32, #tpu.memory_space<smem>>
    %36 = vector.broadcast %35 : f32 to vector<8x128xf32>
    %37 = arith.select %31, %36, %21 : vector<8x128xi1>, vector<8x128xf32>
    %c26 = arith.constant 26 : index
    %38 = memref.load %arg1[%c26] : memref<48xf32, #tpu.memory_space<smem>>
    %39 = vector.broadcast %38 : f32 to vector<8x128xf32>
    %40 = arith.select %31, %39, %25 : vector<8x128xi1>, vector<8x128xf32>
    %c33 = arith.constant 33 : index
    %41 = memref.load %arg1[%c33] : memref<48xf32, #tpu.memory_space<smem>>
    %42 = vector.broadcast %41 : f32 to vector<8x128xf32>
    %43 = arith.select %31, %42, %29 : vector<8x128xi1>, vector<8x128xf32>
    %cst_12 = arith.constant 3.000000e+00 : f32
    %44 = vector.broadcast %cst_12 : f32 to vector<8x128xf32>
    %45 = arith.cmpf oeq, %7, %44 : vector<8x128xf32>
    %c36 = arith.constant 36 : index
    %46 = memref.load %arg1[%c36] : memref<48xf32, #tpu.memory_space<smem>>
    %47 = vector.broadcast %46 : f32 to vector<8x128xf32>
    %48 = arith.select %45, %47, %34 : vector<8x128xi1>, vector<8x128xf32>
    %c37 = arith.constant 37 : index
    %49 = memref.load %arg1[%c37] : memref<48xf32, #tpu.memory_space<smem>>
    %50 = vector.broadcast %49 : f32 to vector<8x128xf32>
    %51 = arith.select %45, %50, %37 : vector<8x128xi1>, vector<8x128xf32>
    %c38 = arith.constant 38 : index
    %52 = memref.load %arg1[%c38] : memref<48xf32, #tpu.memory_space<smem>>
    %53 = vector.broadcast %52 : f32 to vector<8x128xf32>
    %54 = arith.select %45, %53, %40 : vector<8x128xi1>, vector<8x128xf32>
    %c45 = arith.constant 45 : index
    %55 = memref.load %arg1[%c45] : memref<48xf32, #tpu.memory_space<smem>>
    %56 = vector.broadcast %55 : f32 to vector<8x128xf32>
    %57 = arith.select %45, %56, %43 : vector<8x128xi1>, vector<8x128xf32>
    %58 = arith.mulf %48, %3 : vector<8x128xf32>
    %59 = arith.mulf %51, %5 : vector<8x128xf32>
    %60 = arith.addf %58, %59 : vector<8x128xf32>
    %61 = arith.addf %60, %54 : vector<8x128xf32>
    %62 = arith.mulf %61, %1 : vector<8x128xf32>
    %63 = arith.addf %62, %57 : vector<8x128xf32>
    %c0_13 = arith.constant 0 : index
    %c0_14 = arith.constant 0 : index
    %c0_15 = arith.constant 0 : index
    %64 = vector.load %arg3[%c0_13, %c0_14, %c0_15] : memref<3x8x128xf32, #tpu.memory_space<vmem>>, vector<1x8x128xf32>
    %65 = vector.shape_cast %64 : vector<1x8x128xf32> to vector<8x128xf32>
    %66 = vector.shape_cast %63 : vector<8x128xf32> to vector<1x8x128xf32>
    tpu.vector_store %arg3[%c0_13, %c0_14, %c0_15], %66 {strides = array<i32>} : memref<3x8x128xf32, #tpu.memory_space<vmem>>, vector<1x8x128xf32>,
    %c0_16 = arith.constant 0 : index
    %c0_17 = arith.constant 0 : index
    %c0_18 = arith.constant 0 : index
    %67 = vector.load %arg2[%c0_16, %c0_17, %c0_18] : memref<4x8x128xf32, #tpu.memory_space<vmem>>, vector<1x8x128xf32>
    %68 = vector.shape_cast %67 : vector<1x8x128xf32> to vector<8x128xf32>
    %c1_19 = arith.constant 1 : index
    %c0_20 = arith.constant 0 : index
    %c0_21 = arith.constant 0 : index
    %69 = vector.load %arg2[%c1_19, %c0_20, %c0_21] : memref<4x8x128xf32, #tpu.memory_space<vmem>>, vector<1x8x128xf32>
    %70 = vector.shape_cast %69 : vector<1x8x128xf32> to vector<8x128xf32>
    %c2_22 = arith.constant 2 : index
    %c0_23 = arith.constant 0 : index
    %c0_24 = arith.constant 0 : index
    %71 = vector.load %arg2[%c2_22, %c0_23, %c0_24] : memref<4x8x128xf32, #tpu.memory_space<vmem>>, vector<1x8x128xf32>
    %72 = vector.shape_cast %71 : vector<1x8x128xf32> to vector<8x128xf32>
    %c3_25 = arith.constant 3 : index
    %c0_26 = arith.constant 0 : index
    %c0_27 = arith.constant 0 : index
    %73 = vector.load %arg2[%c3_25, %c0_26, %c0_27] : memref<4x8x128xf32, #tpu.memory_space<vmem>>, vector<1x8x128xf32>
    %74 = vector.shape_cast %73 : vector<1x8x128xf32> to vector<8x128xf32>
    %c3_28 = arith.constant 3 : index
    %75 = memref.load %arg1[%c3_28] : memref<48xf32, #tpu.memory_space<smem>>
    %c4 = arith.constant 4 : index
    %76 = memref.load %arg1[%c4] : memref<48xf32, #tpu.memory_space<smem>>
    %c5 = arith.constant 5 : index
    %77 = memref.load %arg1[%c5] : memref<48xf32, #tpu.memory_space<smem>>
    %c10 = arith.constant 10 : index
    %78 = memref.load %arg1[%c10] : memref<48xf32, #tpu.memory_space<smem>>
    %cst_29 = arith.constant 1.000000e+00 : f32
    %79 = vector.broadcast %cst_29 : f32 to vector<8x128xf32>
    %80 = arith.cmpf oeq, %74, %79 : vector<8x128xf32>
    %c15 = arith.constant 15 : index
    %81 = memref.load %arg1[%c15] : memref<48xf32, #tpu.memory_space<smem>>
    %82 = vector.broadcast %81 : f32 to vector<8x128xf32>
    %83 = vector.broadcast %75 : f32 to vector<8x128xf32>
    %84 = arith.select %80, %82, %83 : vector<8x128xi1>, vector<8x128xf32>
    %c16 = arith.constant 16 : index
    %85 = memref.load %arg1[%c16] : memref<48xf32, #tpu.memory_space<smem>>
    %86 = vector.broadcast %85 : f32 to vector<8x128xf32>
    %87 = vector.broadcast %76 : f32 to vector<8x128xf32>
    %88 = arith.select %80, %86, %87 : vector<8x128xi1>, vector<8x128xf32>
    %c17 = arith.constant 17 : index
    %89 = memref.load %arg1[%c17] : memref<48xf32, #tpu.memory_space<smem>>
    %90 = vector.broadcast %89 : f32 to vector<8x128xf32>
    %91 = vector.broadcast %77 : f32 to vector<8x128xf32>
    %92 = arith.select %80, %90, %91 : vector<8x128xi1>, vector<8x128xf32>
    %c22 = arith.constant 22 : index
    %93 = memref.load %arg1[%c22] : memref<48xf32, #tpu.memory_space<smem>>
    %94 = vector.broadcast %93 : f32 to vector<8x128xf32>
    %95 = vector.broadcast %78 : f32 to vector<8x128xf32>
    %96 = arith.select %80, %94, %95 : vector<8x128xi1>, vector<8x128xf32>
    %cst_30 = arith.constant 2.000000e+00 : f32
    %97 = vector.broadcast %cst_30 : f32 to vector<8x128xf32>
    %98 = arith.cmpf oeq, %74, %97 : vector<8x128xf32>
    %c27 = arith.constant 27 : index
    %99 = memref.load %arg1[%c27] : memref<48xf32, #tpu.memory_space<smem>>
    %100 = vector.broadcast %99 : f32 to vector<8x128xf32>
    %101 = arith.select %98, %100, %84 : vector<8x128xi1>, vector<8x128xf32>
    %c28 = arith.constant 28 : index
    %102 = memref.load %arg1[%c28] : memref<48xf32, #tpu.memory_space<smem>>
    %103 = vector.broadcast %102 : f32 to vector<8x128xf32>
    %104 = arith.select %98, %103, %88 : vector<8x128xi1>, vector<8x128xf32>
    %c29 = arith.constant 29 : index
    %105 = memref.load %arg1[%c29] : memref<48xf32, #tpu.memory_space<smem>>
    %106 = vector.broadcast %105 : f32 to vector<8x128xf32>
    %107 = arith.select %98, %106, %92 : vector<8x128xi1>, vector<8x128xf32>
    %c34 = arith.constant 34 : index
    %108 = memref.load %arg1[%c34] : memref<48xf32, #tpu.memory_space<smem>>
    %109 = vector.broadcast %108 : f32 to vector<8x128xf32>
    %110 = arith.select %98, %109, %96 : vector<8x128xi1>, vector<8x128xf32>
    %cst_31 = arith.constant 3.000000e+00 : f32
    %111 = vector.broadcast %cst_31 : f32 to vector<8x128xf32>
    %112 = arith.cmpf oeq, %74, %111 : vector<8x128xf32>
    %c39 = arith.constant 39 : index
    %113 = memref.load %arg1[%c39] : memref<48xf32, #tpu.memory_space<smem>>
    %114 = vector.broadcast %113 : f32 to vector<8x128xf32>
    %115 = arith.select %112, %114, %101 : vector<8x128xi1>, vector<8x128xf32>
    %c40 = arith.constant 40 : index
    %116 = memref.load %arg1[%c40] : memref<48xf32, #tpu.memory_space<smem>>
    %117 = vector.broadcast %116 : f32 to vector<8x128xf32>
    %118 = arith.select %112, %117, %104 : vector<8x128xi1>, vector<8x128xf32>
    %c41 = arith.constant 41 : index
    %119 = memref.load %arg1[%c41] : memref<48xf32, #tpu.memory_space<smem>>
    %120 = vector.broadcast %119 : f32 to vector<8x128xf32>
    %121 = arith.select %112, %120, %107 : vector<8x128xi1>, vector<8x128xf32>
    %c46 = arith.constant 46 : index
    %122 = memref.load %arg1[%c46] : memref<48xf32, #tpu.memory_space<smem>>
    %123 = vector.broadcast %122 : f32 to vector<8x128xf32>
    %124 = arith.select %112, %123, %110 : vector<8x128xi1>, vector<8x128xf32>
    %125 = arith.mulf %115, %70 : vector<8x128xf32>
    %126 = arith.mulf %118, %72 : vector<8x128xf32>
    %127 = arith.addf %125, %126 : vector<8x128xf32>
    %128 = arith.addf %127, %121 : vector<8x128xf32>
    %129 = arith.mulf %128, %68 : vector<8x128xf32>
    %130 = arith.addf %129, %124 : vector<8x128xf32>
    %c1_32 = arith.constant 1 : index
    %c0_33 = arith.constant 0 : index
    %c0_34 = arith.constant 0 : index
    %131 = vector.load %arg3[%c1_32, %c0_33, %c0_34] : memref<3x8x128xf32, #tpu.memory_space<vmem>>, vector<1x8x128xf32>
    %132 = vector.shape_cast %131 : vector<1x8x128xf32> to vector<8x128xf32>
    %133 = vector.shape_cast %130 : vector<8x128xf32> to vector<1x8x128xf32>
    tpu.vector_store %arg3[%c1_32, %c0_33, %c0_34], %133 {strides = array<i32>} : memref<3x8x128xf32, #tpu.memory_space<vmem>>, vector<1x8x128xf32>,
    %c0_35 = arith.constant 0 : index
    %c0_36 = arith.constant 0 : index
    %c0_37 = arith.constant 0 : index
    %134 = vector.load %arg2[%c0_35, %c0_36, %c0_37] : memref<4x8x128xf32, #tpu.memory_space<vmem>>, vector<1x8x128xf32>
    %135 = vector.shape_cast %134 : vector<1x8x128xf32> to vector<8x128xf32>
    %c1_38 = arith.constant 1 : index
    %c0_39 = arith.constant 0 : index
    %c0_40 = arith.constant 0 : index
    %136 = vector.load %arg2[%c1_38, %c0_39, %c0_40] : memref<4x8x128xf32, #tpu.memory_space<vmem>>, vector<1x8x128xf32>
    %137 = vector.shape_cast %136 : vector<1x8x128xf32> to vector<8x128xf32>
    %c2_41 = arith.constant 2 : index
    %c0_42 = arith.constant 0 : index
    %c0_43 = arith.constant 0 : index
    %138 = vector.load %arg2[%c2_41, %c0_42, %c0_43] : memref<4x8x128xf32, #tpu.memory_space<vmem>>, vector<1x8x128xf32>
    %139 = vector.shape_cast %138 : vector<1x8x128xf32> to vector<8x128xf32>
    %c3_44 = arith.constant 3 : index
    %c0_45 = arith.constant 0 : index
    %c0_46 = arith.constant 0 : index
    %140 = vector.load %arg2[%c3_44, %c0_45, %c0_46] : memref<4x8x128xf32, #tpu.memory_space<vmem>>, vector<1x8x128xf32>
    %141 = vector.shape_cast %140 : vector<1x8x128xf32> to vector<8x128xf32>
    %c6 = arith.constant 6 : index
    %142 = memref.load %arg1[%c6] : memref<48xf32, #tpu.memory_space<smem>>
    %c7 = arith.constant 7 : index
    %143 = memref.load %arg1[%c7] : memref<48xf32, #tpu.memory_space<smem>>
    %c8 = arith.constant 8 : index
    %144 = memref.load %arg1[%c8] : memref<48xf32, #tpu.memory_space<smem>>
    %c11 = arith.constant 11 : index
    %145 = memref.load %arg1[%c11] : memref<48xf32, #tpu.memory_space<smem>>
    %cst_47 = arith.constant 1.000000e+00 : f32
    %146 = vector.broadcast %cst_47 : f32 to vector<8x128xf32>
    %147 = arith.cmpf oeq, %141, %146 : vector<8x128xf32>
    %c18 = arith.constant 18 : index
    %148 = memref.load %arg1[%c18] : memref<48xf32, #tpu.memory_space<smem>>
    %149 = vector.broadcast %148 : f32 to vector<8x128xf32>
    %150 = vector.broadcast %142 : f32 to vector<8x128xf32>
    %151 = arith.select %147, %149, %150 : vector<8x128xi1>, vector<8x128xf32>
    %c19 = arith.constant 19 : index
    %152 = memref.load %arg1[%c19] : memref<48xf32, #tpu.memory_space<smem>>
    %153 = vector.broadcast %152 : f32 to vector<8x128xf32>
    %154 = vector.broadcast %143 : f32 to vector<8x128xf32>
    %155 = arith.select %147, %153, %154 : vector<8x128xi1>, vector<8x128xf32>
    %c20 = arith.constant 20 : index
    %156 = memref.load %arg1[%c20] : memref<48xf32, #tpu.memory_space<smem>>
    %157 = vector.broadcast %156 : f32 to vector<8x128xf32>
    %158 = vector.broadcast %144 : f32 to vector<8x128xf32>
    %159 = arith.select %147, %157, %158 : vector<8x128xi1>, vector<8x128xf32>
    %c23 = arith.constant 23 : index
    %160 = memref.load %arg1[%c23] : memref<48xf32, #tpu.memory_space<smem>>
    %161 = vector.broadcast %160 : f32 to vector<8x128xf32>
    %162 = vector.broadcast %145 : f32 to vector<8x128xf32>
    %163 = arith.select %147, %161, %162 : vector<8x128xi1>, vector<8x128xf32>
    %cst_48 = arith.constant 2.000000e+00 : f32
    %164 = vector.broadcast %cst_48 : f32 to vector<8x128xf32>
    %165 = arith.cmpf oeq, %141, %164 : vector<8x128xf32>
    %c30 = arith.constant 30 : index
    %166 = memref.load %arg1[%c30] : memref<48xf32, #tpu.memory_space<smem>>
    %167 = vector.broadcast %166 : f32 to vector<8x128xf32>
    %168 = arith.select %165, %167, %151 : vector<8x128xi1>, vector<8x128xf32>
    %c31 = arith.constant 31 : index
    %169 = memref.load %arg1[%c31] : memref<48xf32, #tpu.memory_space<smem>>
    %170 = vector.broadcast %169 : f32 to vector<8x128xf32>
    %171 = arith.select %165, %170, %155 : vector<8x128xi1>, vector<8x128xf32>
    %c32 = arith.constant 32 : index
    %172 = memref.load %arg1[%c32] : memref<48xf32, #tpu.memory_space<smem>>
    %173 = vector.broadcast %172 : f32 to vector<8x128xf32>
    %174 = arith.select %165, %173, %159 : vector<8x128xi1>, vector<8x128xf32>
    %c35 = arith.constant 35 : index
    %175 = memref.load %arg1[%c35] : memref<48xf32, #tpu.memory_space<smem>>
    %176 = vector.broadcast %175 : f32 to vector<8x128xf32>
    %177 = arith.select %165, %176, %163 : vector<8x128xi1>, vector<8x128xf32>
    %cst_49 = arith.constant 3.000000e+00 : f32
    %178 = vector.broadcast %cst_49 : f32 to vector<8x128xf32>
    %179 = arith.cmpf oeq, %141, %178 : vector<8x128xf32>
    %c42 = arith.constant 42 : index
    %180 = memref.load %arg1[%c42] : memref<48xf32, #tpu.memory_space<smem>>
    %181 = vector.broadcast %180 : f32 to vector<8x128xf32>
    %182 = arith.select %179, %181, %168 : vector<8x128xi1>, vector<8x128xf32>
    %c43 = arith.constant 43 : index
    %183 = memref.load %arg1[%c43] : memref<48xf32, #tpu.memory_space<smem>>
    %184 = vector.broadcast %183 : f32 to vector<8x128xf32>
    %185 = arith.select %179, %184, %171 : vector<8x128xi1>, vector<8x128xf32>
    %c44 = arith.constant 44 : index
    %186 = memref.load %arg1[%c44] : memref<48xf32, #tpu.memory_space<smem>>
    %187 = vector.broadcast %186 : f32 to vector<8x128xf32>
    %188 = arith.select %179, %187, %174 : vector<8x128xi1>, vector<8x128xf32>
    %c47 = arith.constant 47 : index
    %189 = memref.load %arg1[%c47] : memref<48xf32, #tpu.memory_space<smem>>
    %190 = vector.broadcast %189 : f32 to vector<8x128xf32>
    %191 = arith.select %179, %190, %177 : vector<8x128xi1>, vector<8x128xf32>
    %192 = arith.mulf %182, %137 : vector<8x128xf32>
    %193 = arith.mulf %185, %139 : vector<8x128xf32>
    %194 = arith.addf %192, %193 : vector<8x128xf32>
    %195 = arith.addf %194, %188 : vector<8x128xf32>
    %196 = arith.mulf %195, %135 : vector<8x128xf32>
    %197 = arith.addf %196, %191 : vector<8x128xf32>
    %c2_50 = arith.constant 2 : index
    %c0_51 = arith.constant 0 : index
    %c0_52 = arith.constant 0 : index
    %198 = vector.load %arg3[%c2_50, %c0_51, %c0_52] : memref<3x8x128xf32, #tpu.memory_space<vmem>>, vector<1x8x128xf32>
    %199 = vector.shape_cast %198 : vector<1x8x128xf32> to vector<8x128xf32>
    %200 = vector.shape_cast %197 : vector<8x128xf32> to vector<1x8x128xf32>
    tpu.vector_store %arg3[%c2_50, %c0_51, %c0_52], %200 {strides = array<i32>} : memref<3x8x128xf32, #tpu.memory_space<vmem>>, vector<1x8x128xf32>,
    return
  }
  func.func @transform_0(%arg0: i32, %arg1: memref<48xf32, #tpu.memory_space<smem>>) -> (i32, i32, i32) {
    %c0_i32 = arith.constant 0 : i32
    %c0_i32_0 = arith.constant 0 : i32
    %c0_i32_1 = arith.constant 0 : i32
    return %c0_i32, %arg0, %c0_i32_0 : i32, i32, i32
  }
  func.func @transform_1(%arg0: i32, %arg1: memref<48xf32, #tpu.memory_space<smem>>) -> (i32, i32, i32) {
    %c0_i32 = arith.constant 0 : i32
    %c0_i32_0 = arith.constant 0 : i32
    %c0_i32_1 = arith.constant 0 : i32
    return %c0_i32, %arg0, %c0_i32_0 : i32, i32, i32
  }
}

</mosaic_0001>

<llo_original>
// kernel: tpu_custom_call.1
$region0: #{tpu_custom_call.1}
  #allocation0 [shape = 'u32[]', space=smem, size = 0x4, offset = 0x4, fixed_abs, tag = 'smem constant byte address 0x4 - core index']
  #allocation1 [shape = 'u32[144,128]{1,0:T(1,128)}', space=vmem, size = 0x12000, scoped, tag = 'internal scratch']
  #allocation2 [shape = 's32[1]{0}', space=sflag, size = 0x4, scoped, tag = 'scoped memory for tpu_custom_call.1']
  #allocation3 [shape = 'u8[512]{0}', space=smem, size = 0x200, scoped, tag = 'prefetched SMEM operand 0']
  %s0 = inlined_call_operand.hbm [shape: f32[48], index: 0, kind: input, shape index: {}]
  %s1 = inlined_call_operand.hbm [shape: f32[4,8,128], index: 1, kind: input, shape index: {}]
  %s2 = inlined_call_operand.hbm [shape: f32[3,8,128], index: 2, kind: output, shape index: {}]
  %s3 = sld [smem:[#allocation0]]
  $region18: #{tpu_custom_call.1} parent=0
    _
  %s5 = ssub.s32 1, %s3
  %s6 = scalar_select 0, %s5, %s3
  %8 = dma.hbm_to_smem %s0, 16, [#allocation3], [#allocation2]
  %9 = dma.done [#allocation2], 16
  %10 = sfence
  $region1: #{tpu_custom_call.1} parent=0
    #allocation4 [shape = 'u8[16384]{0}', space=vmem, size = 0x4000, scoped, tag = 'input window, operand 1, single buffered']
    #allocation5 [shape = 's32[1]{0}', space=sflag, size = 0x4, scoped, tag = 'scoped memory for tpu_custom_call.1']
    #allocation6 [shape = 's32[1]{0}', space=sflag, size = 0x4, scoped, tag = 'scoped memory for tpu_custom_call.1']
    #allocation7 [shape = 'u8[12288]{0}', space=vmem, size = 0x3000, scoped, tag = 'output window, operand 0, single buffered']
    %11 = vsyncpa [#allocation5], 0
    %12 = vsyncpa [#allocation6], 0
    // Predicated region
    $region2: #{tpu_custom_call.1} parent=1 // pred_check
      _
    $region3: #{tpu_custom_call.1} parent=1 // pred_check_branch
      %14 = sbr.rel (0) target = $region5
    $region4: #{tpu_custom_call.1} parent=1 // pred_region
      %s16 = ssub.s32 512, 512
      %17 = vsyncadd [#allocation5], %s16
      %s18 = sshll.u32 [#allocation4], 4
      %s19 = int_to_ptr.vmem [resolvable:$true] %s18
      %24 = dma.hbm_to_vmem [thread:$0]  %s1, 512, %s19, [#allocation5], 128, 128, 8
    $region5: #{tpu_custom_call.1} parent=1 // pred_fallthru
      _
    // Predicated region
    $region6: #{tpu_custom_call.1} parent=1 // pred_check
      _
    $region7: #{tpu_custom_call.1} parent=1 // pred_check_branch
      %26 = sbr.rel (0) target = $region9
    $region8: #{tpu_custom_call.1} parent=1 // pred_region
      %27 = dma.done [#allocation5], 512
    $region9: #{tpu_custom_call.1} parent=1 // pred_fallthru
      _
    %v28 = vld [vmem:[#allocation4] sm:$0xff]
    %s29 = scalar_lea.vmem [#allocation4], 8
    %v30 = vld [vmem:[%s29] sm:$0xff]
    %s31 = scalar_lea.vmem [#allocation4], 16
    %v32 = vld [vmem:[%s31] sm:$0xff]
    %s33 = scalar_lea.vmem [#allocation4], 24
    %v34 = vld [vmem:[%s33] sm:$0xff]
    %s35 = sld [smem:[#allocation3]]
    %s36 = sld [smem:[#allocation3 + $0x1]]
    %s37 = sld [smem:[#allocation3 + $0x2]]
    %s38 = sld [smem:[#allocation3 + $0x9]]
    %vm39 = vcmp.eq.f32.partialorder %v34, 1.0
    %s40 = sld [smem:[#allocation3 + $0xc]]
    %v41 = vstv %s40
    %v42 = vstv %s35
    %v43 = vsel %vm39, %v41, %v42
    %s44 = sld [smem:[#allocation3 + $0xd]]
    %v45 = vstv %s44
    %v46 = vstv %s36
    %v47 = vsel %vm39, %v45, %v46
    %s48 = sld [smem:[#allocation3 + $0xe]]
    %v49 = vstv %s48
    %v50 = vstv %s37
    %v51 = vsel %vm39, %v49, %v50
    %s52 = sld [smem:[#allocation3 + $0x15]]
    %v53 = vstv %s52
    %v54 = vstv %s38
    %v55 = vsel %vm39, %v53, %v54
    %vm56 = vcmp.eq.f32.partialorder %v34, 2.0
    %s57 = sld [smem:[#allocation3 + $0x18]]
    %v58 = vstv %s57
    %v59 = vsel %vm56, %v58, %v43
    %s60 = sld [smem:[#allocation3 + $0x19]]
    %v61 = vstv %s60
    %v62 = vsel %vm56, %v61, %v47
    %s63 = sld [smem:[#allocation3 + $0x1a]]
    %v64 = vstv %s63
    %v65 = vsel %vm56, %v64, %v51
    %s66 = sld [smem:[#allocation3 + $0x21]]
    %v67 = vstv %s66
    %v68 = vsel %vm56, %v67, %v55
    %vm69 = vcmp.eq.f32.partialorder %v34, 3.0
    %s70 = sld [smem:[#allocation3 + $0x24]]
    %v71 = vstv %s70
    %v72 = vsel %vm69, %v71, %v59
    %s73 = sld [smem:[#allocation3 + $0x25]]
    %v74 = vstv %s73
    %v75 = vsel %vm69, %v74, %v62
    %s76 = sld [smem:[#allocation3 + $0x26]]
    %v77 = vstv %s76
    %v78 = vsel %vm69, %v77, %v65
    %s79 = sld [smem:[#allocation3 + $0x2d]]
    %v80 = vstv %s79
    %v81 = vsel %vm69, %v80, %v68
    %v82 = vmul.f32 %v72, %v30
    %v83 = vmul.f32 %v75, %v32
    %v84 = vadd.f32 %v82, %v83
    %v85 = vadd.f32 %v84, %v78
    %v86 = vmul.f32 %v85, %v28
    %v87 = vadd.f32 %v86, %v81
    %88 = vst [vmem:[#allocation7] sm:$0xff] %v87
    %v89 = vld [vmem:[#allocation4] sm:$0xff]
    %v90 = vld [vmem:[%s29] sm:$0xff]
    %v91 = vld [vmem:[%s31] sm:$0xff]
    %v92 = vld [vmem:[%s33] sm:$0xff]
    %s93 = sld [smem:[#allocation3 + $0x3]]
    %s94 = sld [smem:[#allocation3 + $0x4]]
    %s95 = sld [smem:[#allocation3 + $0x5]]
    %s96 = sld [smem:[#allocation3 + $0xa]]
    %vm97 = vcmp.eq.f32.partialorder %v92, 1.0
    %s98 = sld [smem:[#allocation3 + $0xf]]
    %v99 = vstv %s98
    %v100 = vstv %s93
    %v101 = vsel %vm97, %v99, %v100
    %s102 = sld [smem:[#allocation3 + $0x10]]
    %v103 = vstv %s102
    %v104 = vstv %s94
    %v105 = vsel %vm97, %v103, %v104
    %s106 = sld [smem:[#allocation3 + $0x11]]
    %v107 = vstv %s106
    %v108 = vstv %s95
    %v109 = vsel %vm97, %v107, %v108
    %s110 = sld [smem:[#allocation3 + $0x16]]
    %v111 = vstv %s110
    %v112 = vstv %s96
    %v113 = vsel %vm97, %v111, %v112
    %vm114 = vcmp.eq.f32.partialorder %v92, 2.0
    %s115 = sld [smem:[#allocation3 + $0x1b]]
    %v116 = vstv %s115
    %v117 = vsel %vm114, %v116, %v101
    %s118 = sld [smem:[#allocation3 + $0x1c]]
    %v119 = vstv %s118
    %v120 = vsel %vm114, %v119, %v105
    %s121 = sld [smem:[#allocation3 + $0x1d]]
    %v122 = vstv %s121
    %v123 = vsel %vm114, %v122, %v109
    %s124 = sld [smem:[#allocation3 + $0x22]]
    %v125 = vstv %s124
    %v126 = vsel %vm114, %v125, %v113
    %vm127 = vcmp.eq.f32.partialorder %v92, 3.0
    %s128 = sld [smem:[#allocation3 + $0x27]]
    %v129 = vstv %s128
    %v130 = vsel %vm127, %v129, %v117
    %s131 = sld [smem:[#allocation3 + $0x28]]
    %v132 = vstv %s131
    %v133 = vsel %vm127, %v132, %v120
    %s134 = sld [smem:[#allocation3 + $0x29]]
    %v135 = vstv %s134
    %v136 = vsel %vm127, %v135, %v123
    %s137 = sld [smem:[#allocation3 + $0x2e]]
    %v138 = vstv %s137
    %v139 = vsel %vm127, %v138, %v126
    %v140 = vmul.f32 %v130, %v90
    %v141 = vmul.f32 %v133, %v91
    %v142 = vadd.f32 %v140, %v141
    %v143 = vadd.f32 %v142, %v136
    %v144 = vmul.f32 %v143, %v89
    %v145 = vadd.f32 %v144, %v139
    %s146 = scalar_lea.vmem [#allocation7], 8
    %147 = vst [vmem:[%s146] sm:$0xff] %v145
    %v148 = vld [vmem:[#allocation4] sm:$0xff]
    %v149 = vld [vmem:[%s29] sm:$0xff]
    %v150 = vld [vmem:[%s31] sm:$0xff]
    %v151 = vld [vmem:[%s33] sm:$0xff]
    %s152 = sld [smem:[#allocation3 + $0x6]]
    %s153 = sld [smem:[#allocation3 + $0x7]]
    %s154 = sld [smem:[#allocation3 + $0x8]]
    %s155 = sld [smem:[#allocation3 + $0xb]]
    %vm156 = vcmp.eq.f32.partialorder %v151, 1.0
    %s157 = sld [smem:[#allocation3 + $0x12]]
    %v158 = vstv %s157
    %v159 = vstv %s152
    %v160 = vsel %vm156, %v158, %v159
    %s161 = sld [smem:[#allocation3 + $0x13]]
    %v162 = vstv %s161
    %v163 = vstv %s153
    %v164 = vsel %vm156, %v162, %v163
    %s165 = sld [smem:[#allocation3 + $0x14]]
    %v166 = vstv %s165
    %v167 = vstv %s154
    %v168 = vsel %vm156, %v166, %v167
    %s169 = sld [smem:[#allocation3 + $0x17]]
    %v170 = vstv %s169
    %v171 = vstv %s155
    %v172 = vsel %vm156, %v170, %v171
    %vm173 = vcmp.eq.f32.partialorder %v151, 2.0
    %s174 = sld [smem:[#allocation3 + $0x1e]]
    %v175 = vstv %s174
    %v176 = vsel %vm173, %v175, %v160
    %s177 = sld [smem:[#allocation3 + $0x1f]]
    %v178 = vstv %s177
    %v179 = vsel %vm173, %v178, %v164
    %s180 = sld [smem:[#allocation3 + $0x20]]
    %v181 = vstv %s180
    %v182 = vsel %vm173, %v181, %v168
    %s183 = sld [smem:[#allocation3 + $0x23]]
    %v184 = vstv %s183
    %v185 = vsel %vm173, %v184, %v172
    %vm186 = vcmp.eq.f32.partialorder %v151, 3.0
    %s187 = sld [smem:[#allocation3 + $0x2a]]
    %v188 = vstv %s187
    %v189 = vsel %vm186, %v188, %v176
    %s190 = sld [smem:[#allocation3 + $0x2b]]
    %v191 = vstv %s190
    %v192 = vsel %vm186, %v191, %v179
    %s193 = sld [smem:[#allocation3 + $0x2c]]
    %v194 = vstv %s193
    %v195 = vsel %vm186, %v194, %v182
    %s196 = sld [smem:[#allocation3 + $0x2f]]
    %v197 = vstv %s196
    %v198 = vsel %vm186, %v197, %v185
    %v199 = vmul.f32 %v189, %v149
    %v200 = vmul.f32 %v192, %v150
    %v201 = vadd.f32 %v199, %v200
    %v202 = vadd.f32 %v201, %v195
    %v203 = vmul.f32 %v202, %v148
    %v204 = vadd.f32 %v203, %v198
    %s205 = scalar_lea.vmem [#allocation7], 16
    %206 = vst [vmem:[%s205] sm:$0xff] %v204
    // Predicated region
    $region10: #{tpu_custom_call.1} parent=1 // pred_check
      _
    $region11: #{tpu_custom_call.1} parent=1 // pred_check_branch
      %208 = sbr.rel (0) target = $region13
    $region12: #{tpu_custom_call.1} parent=1 // pred_region
      %s210 = ssub.s32 384, 384
      %211 = vsyncadd [#allocation6], %s210
      %s212 = sshll.u32 [#allocation7], 4
      %s213 = int_to_ptr.vmem [resolvable:$true] %s212
      %218 = dma.vmem_to_hbm [thread:$0]  %s213, 384, %s2, [#allocation6], 128, 128, 8
    $region13: #{tpu_custom_call.1} parent=1 // pred_fallthru
      _
    // Predicated region
    $region14: #{tpu_custom_call.1} parent=1 // pred_check
      _
    $region15: #{tpu_custom_call.1} parent=1 // pred_check_branch
      %220 = sbr.rel (0) target = $region17
    $region16: #{tpu_custom_call.1} parent=1 // pred_region
      %221 = dma.done [#allocation6], 384
    $region17: #{tpu_custom_call.1} parent=1 // pred_fallthru
      _
    %222 = vsyncpa [#allocation5], 1
    %223 = vsyncpa [#allocation6], 1

</llo_original>
